<compile_context>
chip_gen: v7x
topology: tpu7x:2x2x1
jax: 0.10.0
libtpu: 0.0.40
codegen_flags: <defaults>
</compile_context>

<pallas_src>
import functools

import jax
import jax.numpy as jnp
from jax.experimental import pallas as pl
from jax.experimental.pallas import tpu as pltpu


def _attention_kernel(x_ref, wq_ref, bq_ref, wk_ref, bk_ref,
                      wv_ref, bv_ref, wd_ref, bd_ref, o_ref, *, scale):
    # x_ref: (1, S, D)   weights: (D, D)   biases: (1, D)   o_ref: (1, S, D)
    x = x_ref[0].astype(jnp.float32)                      # (S, D)

    wq = wq_ref[...].astype(jnp.float32)
    wk = wk_ref[...].astype(jnp.float32)
    wv = wv_ref[...].astype(jnp.float32)
    wd = wd_ref[...].astype(jnp.float32)
    bq = bq_ref[...].astype(jnp.float32)                  # (1, D) broadcasts over rows
    bk = bk_ref[...].astype(jnp.float32)
    bv = bv_ref[...].astype(jnp.float32)
    bd = bd_ref[...].astype(jnp.float32)

    # Projections (MXU, f32 accumulation).
    q = jnp.dot(x, wq, preferred_element_type=jnp.float32) + bq   # (S, D)
    k = jnp.dot(x, wk, preferred_element_type=jnp.float32) + bk   # (S, D)
    v = jnp.dot(x, wv, preferred_element_type=jnp.float32) + bv   # (S, D)

    # Scaled dot-product attention.
    scores = jnp.dot(q, k.T, preferred_element_type=jnp.float32) * scale   # (S, S)
    m = jnp.max(scores, axis=-1, keepdims=True)
    p = jnp.exp(scores - m)                                # EUP transcendental
    attn = p / jnp.sum(p, axis=-1, keepdims=True)

    y = jnp.dot(attn, v, preferred_element_type=jnp.float32)               # (S, D)
    out = jnp.dot(y, wd, preferred_element_type=jnp.float32) + bd          # (S, D)

    o_ref[0] = out.astype(o_ref.dtype)


def attention(x, wq, bq, wk, bk, wv, bv, wd, bd):
    """Single-head attention. x: (B, S, D); weights (D, D) in (in, out) layout;
    biases (D,). Equivalent to the PyTorch module's forward."""
    B, S, D = x.shape
    scale = 1.0 / (D ** 0.5)

    # Biases as (1, D) 2-D slabs (lane-major) for TPU-friendly layout.
    bq2, bk2, bv2, bd2 = (b.reshape(1, D) for b in (bq, bk, bv, bd))

    itemsize = jnp.dtype(x.dtype).itemsize
    f32 = 4
    # Double-buffered x + out blocks, resident weights/biases, f32 intermediates.
    block_bytes = (
        2 * 2 * S * D * itemsize
        + 4 * D * D * itemsize + 4 * D * itemsize
        + f32 * (5 * S * D + 2 * S * S)
    )
    vmem_limit = int(min(max(2 * block_bytes, 32 * 1024 * 1024),
                         100 * 1024 * 1024))

    # Advisory cost estimate (per full call).
    flops = B * (3 * 2 * S * D * D       # q, k, v projections
                 + 2 * S * S * D         # q @ k^T
                 + 2 * S * S * D         # attn @ v
                 + 2 * S * D * D)        # output dense
    transcendentals = B * S * S          # exp in softmax
    bytes_accessed = (2 * B * S * D * itemsize
                      + 4 * D * D * itemsize + 4 * D * itemsize)
    cost = pl.CostEstimate(flops=flops,
                           transcendentals=transcendentals,
                           bytes_accessed=bytes_accessed)

    w_spec = pl.BlockSpec((D, D), lambda b: (0, 0))
    b_spec = pl.BlockSpec((1, D), lambda b: (0, 0))

    out = pl.pallas_call(
        functools.partial(_attention_kernel, scale=scale),
        out_shape=jax.ShapeDtypeStruct((B, S, D), x.dtype),
        grid_spec=pltpu.PrefetchScalarGridSpec(
            num_scalar_prefetch=0,
            grid=(B,),
            in_specs=[
                pl.BlockSpec((1, S, D), lambda b: (b, 0, 0)),   # x
                w_spec, b_spec,                                 # Wq, bq
                w_spec, b_spec,                                 # Wk, bk
                w_spec, b_spec,                                 # Wv, bv
                w_spec, b_spec,                                 # Wd, bd
            ],
            out_specs=pl.BlockSpec((1, S, D), lambda b: (b, 0, 0)),
        ),
        compiler_params=pltpu.CompilerParams(
            dimension_semantics=("parallel",),
            vmem_limit_bytes=vmem_limit,
        ),
        cost_estimate=cost,
    )(x, wq, bq2, wk, bk2, wv, bv2, wd, bd2)

    return out


if __name__ == "__main__":
    key = jax.random.PRNGKey(0)
    batch, seq, hidden = 2, 8, 32

    keys = jax.random.split(key, 9)
    x = jax.random.normal(keys[0], (batch, seq, hidden), dtype=jnp.float32)

    def init_w(k):
        return jax.random.normal(k, (hidden, hidden), dtype=jnp.float32) * (hidden ** -0.5)

    def init_b(k):
        return jax.random.normal(k, (hidden,), dtype=jnp.float32) * 0.02

    wq, bq = init_w(keys[1]), init_b(keys[2])
    wk, bk = init_w(keys[3]), init_b(keys[4])
    wv, bv = init_w(keys[5]), init_b(keys[6])
    wd, bd = init_w(keys[7]), init_b(keys[8])

    out = attention(x, wq, bq, wk, bk, wv, bv, wd, bd)
    out = jax.block_until_ready(out)

    # Pure-JAX reference (same math as the PyTorch forward).
    hp = jax.lax.Precision.HIGHEST
    q = jnp.einsum("bsd,de->bse", x, wq, precision=hp) + bq
    k = jnp.einsum("bsd,de->bse", x, wk, precision=hp) + bk
    v = jnp.einsum("bsd,de->bse", x, wv, precision=hp) + bv
    scores = jnp.einsum("bqd,bkd->bqk", q, k, precision=hp) / (hidden ** 0.5)
    attn = jax.nn.softmax(scores, axis=-1)
    y = jnp.einsum("bqk,bkd->bqd", attn, v, precision=hp)
    ref = jnp.einsum("bsd,de->bse", y, wd, precision=hp) + bd

    assert out.shape == ref.shape
    assert jnp.allclose(out, ref, atol=1e-3, rtol=1e-3), "mismatch vs reference"

    print("KERNEL_OK")
</pallas_src>

<mosaic_0001>
module attributes {stable_mosaic.version = 11 : i64} {
  func.func @_attention_kernel(%arg0: i32, %arg1: memref<1x8x32xf32, #tpu.memory_space<vmem>>, %arg2: memref<32x32xf32, #tpu.memory_space<vmem>>, %arg3: memref<1x32xf32, #tpu.memory_space<vmem>>, %arg4: memref<32x32xf32, #tpu.memory_space<vmem>>, %arg5: memref<1x32xf32, #tpu.memory_space<vmem>>, %arg6: memref<32x32xf32, #tpu.memory_space<vmem>>, %arg7: memref<1x32xf32, #tpu.memory_space<vmem>>, %arg8: memref<32x32xf32, #tpu.memory_space<vmem>>, %arg9: memref<1x32xf32, #tpu.memory_space<vmem>>, %arg10: memref<1x8x32xf32, #tpu.memory_space<vmem>>) attributes {dimension_semantics = [#tpu.dimension_semantics<parallel>], iteration_bounds = array<i64: 2>, scalar_prefetch = 0 : i64, scratch_operands = 0 : i64, tpu.core_type = #tpu.core_type<tc>, window_params = [{transform_indices = @transform_0, window_bounds = array<i64: 1, 8, 32>}, {pipeline_mode = #tpu.pipeline_mode<synchronous>, transform_indices = @transform_1, window_bounds = array<i64: 32, 32>}, {pipeline_mode = #tpu.pipeline_mode<synchronous>, transform_indices = @transform_2, window_bounds = array<i64: 1, 32>}, {pipeline_mode = #tpu.pipeline_mode<synchronous>, transform_indices = @transform_3, window_bounds = array<i64: 32, 32>}, {pipeline_mode = #tpu.pipeline_mode<synchronous>, transform_indices = @transform_4, window_bounds = array<i64: 1, 32>}, {pipeline_mode = #tpu.pipeline_mode<synchronous>, transform_indices = @transform_5, window_bounds = array<i64: 32, 32>}, {pipeline_mode = #tpu.pipeline_mode<synchronous>, transform_indices = @transform_6, window_bounds = array<i64: 1, 32>}, {pipeline_mode = #tpu.pipeline_mode<synchronous>, transform_indices = @transform_7, window_bounds = array<i64: 32, 32>}, {pipeline_mode = #tpu.pipeline_mode<synchronous>, transform_indices = @transform_8, window_bounds = array<i64: 1, 32>}, {transform_indices = @transform_9, window_bounds = array<i64: 1, 8, 32>}]} {
    %c0 = arith.constant 0 : index
    %c0_0 = arith.constant 0 : index
    %c0_1 = arith.constant 0 : index
    %0 = vector.load %arg1[%c0, %c0_0, %c0_1] : memref<1x8x32xf32, #tpu.memory_space<vmem>>, vector<1x8x32xf32>
    %1 = vector.shape_cast %0 : vector<1x8x32xf32> to vector<8x32xf32>
    %c0_2 = arith.constant 0 : index
    %c0_3 = arith.constant 0 : index
    %2 = vector.load %arg2[%c0_2, %c0_3] : memref<32x32xf32, #tpu.memory_space<vmem>>, vector<32x32xf32>
    %c0_4 = arith.constant 0 : index
    %c0_5 = arith.constant 0 : index
    %3 = vector.load %arg4[%c0_4, %c0_5] : memref<32x32xf32, #tpu.memory_space<vmem>>, vector<32x32xf32>
    %c0_6 = arith.constant 0 : index
    %c0_7 = arith.constant 0 : index
    %4 = vector.load %arg6[%c0_6, %c0_7] : memref<32x32xf32, #tpu.memory_space<vmem>>, vector<32x32xf32>
    %c0_8 = arith.constant 0 : index
    %c0_9 = arith.constant 0 : index
    %5 = vector.load %arg8[%c0_8, %c0_9] : memref<32x32xf32, #tpu.memory_space<vmem>>, vector<32x32xf32>
    %c0_10 = arith.constant 0 : index
    %c0_11 = arith.constant 0 : index
    %6 = vector.load %arg3[%c0_10, %c0_11] : memref<1x32xf32, #tpu.memory_space<vmem>>, vector<1x32xf32>
    %c0_12 = arith.constant 0 : index
    %c0_13 = arith.constant 0 : index
    %7 = vector.load %arg5[%c0_12, %c0_13] : memref<1x32xf32, #tpu.memory_space<vmem>>, vector<1x32xf32>
    %c0_14 = arith.constant 0 : index
    %c0_15 = arith.constant 0 : index
    %8 = vector.load %arg7[%c0_14, %c0_15] : memref<1x32xf32, #tpu.memory_space<vmem>>, vector<1x32xf32>
    %c0_16 = arith.constant 0 : index
    %c0_17 = arith.constant 0 : index
    %9 = vector.load %arg9[%c0_16, %c0_17] : memref<1x32xf32, #tpu.memory_space<vmem>>, vector<1x32xf32>
    %cst = arith.constant dense<0.000000e+00> : vector<8x32xf32>
    %10 = tpu.matmul %1, %2, %cst {dimension_numbers = #tpu.dot_dimension_numbers<[1], [0], [0], [1], [0, 0, 1, 1], [], []>} : vector<8x32xf32>, vector<32x32xf32>, vector<8x32xf32> -> vector<8x32xf32>
    %11 = vector.broadcast %6 : vector<1x32xf32> to vector<8x32xf32>
    %12 = arith.addf %10, %11 : vector<8x32xf32>
    %cst_18 = arith.constant dense<0.000000e+00> : vector<8x32xf32>
    %13 = tpu.matmul %1, %3, %cst_18 {dimension_numbers = #tpu.dot_dimension_numbers<[1], [0], [0], [1], [0, 0, 1, 1], [], []>} : vector<8x32xf32>, vector<32x32xf32>, vector<8x32xf32> -> vector<8x32xf32>
    %14 = vector.broadcast %7 : vector<1x32xf32> to vector<8x32xf32>
    %15 = arith.addf %13, %14 : vector<8x32xf32>
    %cst_19 = arith.constant dense<0.000000e+00> : vector<8x32xf32>
    %16 = tpu.matmul %1, %4, %cst_19 {dimension_numbers = #tpu.dot_dimension_numbers<[1], [0], [0], [1], [0, 0, 1, 1], [], []>} : vector<8x32xf32>, vector<32x32xf32>, vector<8x32xf32> -> vector<8x32xf32>
    %17 = vector.broadcast %8 : vector<1x32xf32> to vector<8x32xf32>
    %18 = arith.addf %16, %17 : vector<8x32xf32>
    %19 = tpu.transpose %15, [1, 0] : vector<8x32xf32> -> vector<32x8xf32>
    %cst_20 = arith.constant dense<0.000000e+00> : vector<8x8xf32>
    %20 = tpu.matmul %12, %19, %cst_20 {dimension_numbers = #tpu.dot_dimension_numbers<[1], [0], [0], [1], [0, 0, 1, 1], [], []>} : vector<8x32xf32>, vector<32x8xf32>, vector<8x8xf32> -> vector<8x8xf32>
    %cst_21 = arith.constant 0.176776692 : f32
    %21 = vector.broadcast %cst_21 : f32 to vector<8x8xf32>
    %22 = arith.mulf %20, %21 : vector<8x8xf32>
    %cst_22 = arith.constant dense<0xFF800000> : vector<8xf32>
    %23 = vector.multi_reduction <maximumf>, %22, %cst_22 [1] : vector<8x8xf32> to vector<8xf32>
    %24 = vector.shape_cast %23 : vector<8xf32> to vector<8x1xf32>
    %25 = vector.broadcast %24 : vector<8x1xf32> to vector<8x8xf32>
    %26 = arith.subf %22, %25 : vector<8x8xf32>
    %27 = math.exp %26 : vector<8x8xf32>
    %cst_23 = arith.constant dense<0.000000e+00> : vector<8xf32>
    %28 = vector.multi_reduction <add>, %27, %cst_23 [1] : vector<8x8xf32> to vector<8xf32>
    %29 = vector.shape_cast %28 : vector<8xf32> to vector<8x1xf32>
    %30 = vector.broadcast %29 : vector<8x1xf32> to vector<8x8xf32>
    %31 = arith.divf %27, %30 : vector<8x8xf32>
    %cst_24 = arith.constant dense<0.000000e+00> : vector<8x32xf32>
    %32 = tpu.matmul %31, %18, %cst_24 {dimension_numbers = #tpu.dot_dimension_numbers<[1], [0], [0], [1], [0, 0, 1, 1], [], []>} : vector<8x8xf32>, vector<8x32xf32>, vector<8x32xf32> -> vector<8x32xf32>
    %cst_25 = arith.constant dense<0.000000e+00> : vector<8x32xf32>
    %33 = tpu.matmul %32, %5, %cst_25 {dimension_numbers = #tpu.dot_dimension_numbers<[1], [0], [0], [1], [0, 0, 1, 1], [], []>} : vector<8x32xf32>, vector<32x32xf32>, vector<8x32xf32> -> vector<8x32xf32>
    %34 = vector.broadcast %9 : vector<1x32xf32> to vector<8x32xf32>
    %35 = arith.addf %33, %34 : vector<8x32xf32>
    %c0_26 = arith.constant 0 : index
    %c0_27 = arith.constant 0 : index
    %c0_28 = arith.constant 0 : index
    %36 = vector.load %arg10[%c0_26, %c0_27, %c0_28] : memref<1x8x32xf32, #tpu.memory_space<vmem>>, vector<1x8x32xf32>
    %37 = vector.shape_cast %36 : vector<1x8x32xf32> to vector<8x32xf32>
    %38 = vector.shape_cast %35 : vector<8x32xf32> to vector<1x8x32xf32>
    tpu.vector_store %arg10[%c0_26, %c0_27, %c0_28], %38 {strides = array<i32>} : memref<1x8x32xf32, #tpu.memory_space<vmem>>, vector<1x8x32xf32>,
    return
  }
  func.func @transform_0(%arg0: i32) -> (i32, i32, i32) {
    %c0_i32 = arith.constant 0 : i32
    %c0_i32_0 = arith.constant 0 : i32
    %c0_i32_1 = arith.constant 0 : i32
    return %arg0, %c0_i32, %c0_i32_0 : i32, i32, i32
  }
  func.func @transform_1(%arg0: i32) -> (i32, i32) {
    %c0_i32 = arith.constant 0 : i32
    %c0_i32_0 = arith.constant 0 : i32
    %c0_i32_1 = arith.constant 0 : i32
    return %c0_i32, %c0_i32_0 : i32, i32
  }
  func.func @transform_2(%arg0: i32) -> (i32, i32) {
    %c0_i32 = arith.constant 0 : i32
    %c0_i32_0 = arith.constant 0 : i32
    %c0_i32_1 = arith.constant 0 : i32
    return %c0_i32, %c0_i32_0 : i32, i32
  }
  func.func @transform_3(%arg0: i32) -> (i32, i32) {
    %c0_i32 = arith.constant 0 : i32
    %c0_i32_0 = arith.constant 0 : i32
    %c0_i32_1 = arith.constant 0 : i32
    return %c0_i32, %c0_i32_0 : i32, i32
  }
  func.func @transform_4(%arg0: i32) -> (i32, i32) {
    %c0_i32 = arith.constant 0 : i32
    %c0_i32_0 = arith.constant 0 : i32
    %c0_i32_1 = arith.constant 0 : i32
    return %c0_i32, %c0_i32_0 : i32, i32
  }
  func.func @transform_5(%arg0: i32) -> (i32, i32) {
    %c0_i32 = arith.constant 0 : i32
    %c0_i32_0 = arith.constant 0 : i32
    %c0_i32_1 = arith.constant 0 : i32
    return %c0_i32, %c0_i32_0 : i32, i32
  }
  func.func @transform_6(%arg0: i32) -> (i32, i32) {
    %c0_i32 = arith.constant 0 : i32
    %c0_i32_0 = arith.constant 0 : i32
    %c0_i32_1 = arith.constant 0 : i32
    return %c0_i32, %c0_i32_0 : i32, i32
  }
  func.func @transform_7(%arg0: i32) -> (i32, i32) {
    %c0_i32 = arith.constant 0 : i32
    %c0_i32_0 = arith.constant 0 : i32
    %c0_i32_1 = arith.constant 0 : i32
    return %c0_i32, %c0_i32_0 : i32, i32
  }
  func.func @transform_8(%arg0: i32) -> (i32, i32) {
    %c0_i32 = arith.constant 0 : i32
    %c0_i32_0 = arith.constant 0 : i32
    %c0_i32_1 = arith.constant 0 : i32
    return %c0_i32, %c0_i32_0 : i32, i32
  }
  func.func @transform_9(%arg0: i32) -> (i32, i32, i32) {
    %c0_i32 = arith.constant 0 : i32
    %c0_i32_0 = arith.constant 0 : i32
    %c0_i32_1 = arith.constant 0 : i32
    return %arg0, %c0_i32, %c0_i32_0 : i32, i32, i32
  }
}

</mosaic_0001>

<llo_original>
// kernel: tpu_custom_call.1
$region0: #{tpu_custom_call.1}
  #allocation0 [shape = 'u32[]', space=smem, size = 0x4, offset = 0x4, fixed_abs, tag = 'smem constant byte address 0x4 - core index']
  #allocation1 [shape = 'u32[144,128]{1,0:T(1,128)}', space=vmem, size = 0x12000, scoped, tag = 'internal scratch']
  %s0 = inlined_call_operand.hbm [shape: f32[2,8,32], index: 0, kind: input, shape index: {}]
  %s1 = inlined_call_operand.hbm [shape: f32[32,32], index: 1, kind: input, shape index: {}]
  %s2 = inlined_call_operand.vmem [shape: f32[1,32], index: 2, kind: input, shape index: {}]
  %s3 = inlined_call_operand.hbm [shape: f32[32,32], index: 3, kind: input, shape index: {}]
  %s4 = inlined_call_operand.vmem [shape: f32[1,32], index: 4, kind: input, shape index: {}]
  %s5 = inlined_call_operand.hbm [shape: f32[32,32], index: 5, kind: input, shape index: {}]
  %s6 = inlined_call_operand.vmem [shape: f32[1,32], index: 6, kind: input, shape index: {}]
  %s7 = inlined_call_operand.hbm [shape: f32[32,32], index: 7, kind: input, shape index: {}]
  %s8 = inlined_call_operand.vmem [shape: f32[1,32], index: 8, kind: input, shape index: {}]
  %s9 = inlined_call_operand.hbm [shape: f32[2,8,32], index: 9, kind: output, shape index: {}]
  %s10 = sld [smem:[#allocation0]]
  $region89: #{tpu_custom_call.1} parent=0
    _
  %s12 = ssub.s32 1, %s10
  %s13 = scalar_select 0, %s12, %s10
  $region1: #{tpu_custom_call.1} parent=0
    #allocation2 [shape = 'u8[8192]{0}', space=vmem, size = 0x2000, scoped, tag = 'input window, operand 0']
    #allocation3 [shape = 's32[2]{0}', space=sflag, size = 0x8, scoped, tag = 'scoped memory for tpu_custom_call.1']
    #allocation4 [shape = 's32[2]{0}', space=sflag, size = 0x8, scoped, tag = 'scoped memory for tpu_custom_call.1']
    #allocation5 [shape = 'u8[16384]{0}', space=vmem, size = 0x4000, scoped, tag = 'input window, operand 1, single buffered']
    #allocation6 [shape = 's32[1]{0}', space=sflag, size = 0x4, scoped, tag = 'scoped memory for tpu_custom_call.1']
    #allocation7 [shape = 'u8[16384]{0}', space=vmem, size = 0x4000, scoped, tag = 'input window, operand 3, single buffered']
    #allocation8 [shape = 'u8[16384]{0}', space=vmem, size = 0x4000, scoped, tag = 'input window, operand 5, single buffered']
    #allocation9 [shape = 's32[1]{0}', space=sflag, size = 0x4, scoped, tag = 'scoped memory for tpu_custom_call.1']
    #allocation10 [shape = 'u8[16384]{0}', space=vmem, size = 0x4000, scoped, tag = 'input window, operand 7, single buffered']
    #allocation11 [shape = 'u8[8192]{0}', space=vmem, size = 0x2000, scoped, tag = 'output window, operand 0']
    %14 = vsyncpa [#allocation3], 0
    %s15 = scalar_lea.sflag [#allocation3], 1
    %16 = vsyncpa %s15, 0
    %17 = vsyncpa [#allocation6], 0
    %18 = vsyncpa [#allocation9], 0
    %19 = vsyncpa [#allocation4], 0
    %s20 = scalar_lea.sflag [#allocation4], 1
    %21 = vsyncpa %s20, 0
    loop: start=0, step=1, limit=4
    $region2: #{tpu_custom_call.1} parent=1 // loop_pre_header
      _
    $region3: #{tpu_custom_call.1} parent=1 // loop_header
      %s23 = sphi 0, %s27
      %p24 = scmp.ge.s32.totalorder %s23, 4
      %s33 = sphi 0, %s35
      %s36 = sphi 0, %s33
      %s37 = sphi 0, %s36
      %s53 = sphi 0, %s37
      %s57 = sphi 0, %s57
      %s59 = sphi 0, %s57
      %s60 = sphi 0, %s59
      %s74 = sphi 0, %s60
      %s78 = sphi 0, %s78
      %s80 = sphi 0, %s78
      %s81 = sphi 0, %s80
      %s95 = sphi 0, %s81
      %s99 = sphi 0, %s99
      %s101 = sphi 0, %s99
      %s102 = sphi 0, %s101
      %s116 = sphi 0, %s102
      %s120 = sphi 0, %s120
      %s122 = sphi 0, %s120
      %s123 = sphi 0, %s122
      %s137 = sphi 0, %s123
      %s141 = sphi 0, %s141
      %s143 = sphi 0, %s141
      %s144 = sphi 0, %s143
      %s158 = sphi 0, %s144
      %s162 = sphi 0, %s162
      %s164 = sphi 0, %s162
      %s165 = sphi 0, %s164
      %s179 = sphi 0, %s165
      %s183 = sphi 0, %s183
      %s185 = sphi 0, %s183
      %s186 = sphi 0, %s185
      %s200 = sphi 0, %s186
      %s204 = sphi 0, %s204
      %s206 = sphi 0, %s204
      %s207 = sphi 0, %s206
      %s221 = sphi 0, %s207
      %s227 = sphi 0, %s229
      %s230 = sphi 0, %s227
      %s231 = sphi 0, %s230
      %s247 = sphi 0, %s231
    $region4: #{tpu_custom_call.1} parent=1 // loop_header_branch
      %26 = sbr.rel (%p24) target = $region8
    $region5: #{tpu_custom_call.1} parent=1 // loop_body
      %s28 = ssub.s32 %s23, 1
      %s29 = ssub.s32 %s23, 2
      %s30 = sadd.s32 %s23, 1
      %s31 = ssub.s32 %s23, %s30
      %p32 = scmp.eq.s32.totalorder %s31, 0
      %s34 = sadd.s32 %s33, 1
      %s35 = scalar_select %p32, %s33, %s34
      %p38 = pneg %p32
      %p39 = scmp.eq.s32.totalorder %s23, 1
      %p40 = por %p38, %p39
      %p41 = scmp.ne.s32.totalorder %s33, %s36
      %p42 = scmp.eq.s32.totalorder %s23, 0
      %p43 = por %p41, %p42
      %p44 = scmp.ne.s32.totalorder %s33, %s36
      %p45 = scmp.eq.s32.totalorder %s28, 1
      %p46 = por %p44, %p45
      %p47 = scmp.ne.s32.totalorder %s36, %s37
      %p48 = scmp.eq.s32.totalorder %s28, 0
      %p49 = por %p47, %p48
      %p50 = scmp.ne.s32.totalorder %s36, %s37
      %p51 = scmp.eq.s32.totalorder %s29, 1
      %p52 = por %p50, %p51
      %p54 = scmp.ne.s32.totalorder %s37, %s53
      %p55 = scmp.eq.s32.totalorder %s29, 0
      %p56 = por %p54, %p55
      %s58 = sadd.s32 %s57, 1
      %p61 = scmp.eq.s32.totalorder %s23, 1
      %p62 = scmp.ne.s32.totalorder %s57, %s59
      %p63 = scmp.eq.s32.totalorder %s23, 0
      %p64 = por %p62, %p63
      %p65 = scmp.ne.s32.totalorder %s57, %s59
      %p66 = scmp.eq.s32.totalorder %s28, 1
      %p67 = por %p65, %p66
      %p68 = scmp.ne.s32.totalorder %s59, %s60
      %p69 = scmp.eq.s32.totalorder %s28, 0
      %p70 = por %p68, %p69
      %p71 = scmp.ne.s32.totalorder %s59, %s60
      %p72 = scmp.eq.s32.totalorder %s29, 1
      %p73 = por %p71, %p72
      %p75 = scmp.ne.s32.totalorder %s60, %s74
      %p76 = scmp.eq.s32.totalorder %s29, 0
      %p77 = por %p75, %p76
      %s79 = sadd.s32 %s78, 1
      %p82 = scmp.eq.s32.totalorder %s23, 1
      %p83 = scmp.ne.s32.totalorder %s78, %s80
      %p84 = scmp.eq.s32.totalorder %s23, 0
      %p85 = por %p83, %p84
      %p86 = scmp.ne.s32.totalorder %s78, %s80
      %p87 = scmp.eq.s32.totalorder %s28, 1
      %p88 = por %p86, %p87
      %p89 = scmp.ne.s32.totalorder %s80, %s81
      %p90 = scmp.eq.s32.totalorder %s28, 0
      %p91 = por %p89, %p90
      %p92 = scmp.ne.s32.totalorder %s80, %s81
      %p93 = scmp.eq.s32.totalorder %s29, 1
      %p94 = por %p92, %p93
      %p96 = scmp.ne.s32.totalorder %s81, %s95
      %p97 = scmp.eq.s32.totalorder %s29, 0
      %p98 = por %p96, %p97
      %s100 = sadd.s32 %s99, 1
      %p103 = scmp.eq.s32.totalorder %s23, 1
      %p104 = scmp.ne.s32.totalorder %s99, %s101
      %p105 = scmp.eq.s32.totalorder %s23, 0
      %p106 = por %p104, %p105
      %p107 = scmp.ne.s32.totalorder %s99, %s101
      %p108 = scmp.eq.s32.totalorder %s28, 1
      %p109 = por %p107, %p108
      %p110 = scmp.ne.s32.totalorder %s101, %s102
      %p111 = scmp.eq.s32.totalorder %s28, 0
      %p112 = por %p110, %p111
      %p113 = scmp.ne.s32.totalorder %s101, %s102
      %p114 = scmp.eq.s32.totalorder %s29, 1
      %p115 = por %p113, %p114
      %p117 = scmp.ne.s32.totalorder %s102, %s116
      %p118 = scmp.eq.s32.totalorder %s29, 0
      %p119 = por %p117, %p118
      %s121 = sadd.s32 %s120, 1
      %p124 = scmp.eq.s32.totalorder %s23, 1
      %p125 = scmp.ne.s32.totalorder %s120, %s122
      %p126 = scmp.eq.s32.totalorder %s23, 0
      %p127 = por %p125, %p126
      %p128 = scmp.ne.s32.totalorder %s120, %s122
      %p129 = scmp.eq.s32.totalorder %s28, 1
      %p130 = por %p128, %p129
      %p131 = scmp.ne.s32.totalorder %s122, %s123
      %p132 = scmp.eq.s32.totalorder %s28, 0
      %p133 = por %p131, %p132
      %p134 = scmp.ne.s32.totalorder %s122, %s123
      %p135 = scmp.eq.s32.totalorder %s29, 1
      %p136 = por %p134, %p135
      %p138 = scmp.ne.s32.totalorder %s123, %s137
      %p139 = scmp.eq.s32.totalorder %s29, 0
      %p140 = por %p138, %p139
      %s142 = sadd.s32 %s141, 1
      %p145 = scmp.eq.s32.totalorder %s23, 1
      %p146 = scmp.ne.s32.totalorder %s141, %s143
      %p147 = scmp.eq.s32.totalorder %s23, 0
      %p148 = por %p146, %p147
      %p149 = scmp.ne.s32.totalorder %s141, %s143
      %p150 = scmp.eq.s32.totalorder %s28, 1
      %p151 = por %p149, %p150
      %p152 = scmp.ne.s32.totalorder %s143, %s144
      %p153 = scmp.eq.s32.totalorder %s28, 0
      %p154 = por %p152, %p153
      %p155 = scmp.ne.s32.totalorder %s143, %s144
      %p156 = scmp.eq.s32.totalorder %s29, 1
      %p157 = por %p155, %p156
      %p159 = scmp.ne.s32.totalorder %s144, %s158
      %p160 = scmp.eq.s32.totalorder %s29, 0
      %p161 = por %p159, %p160
      %s163 = sadd.s32 %s162, 1
      %p166 = scmp.eq.s32.totalorder %s23, 1
      %p167 = scmp.ne.s32.totalorder %s162, %s164
      %p168 = scmp.eq.s32.totalorder %s23, 0
      %p169 = por %p167, %p168
      %p170 = scmp.ne.s32.totalorder %s162, %s164
      %p171 = scmp.eq.s32.totalorder %s28, 1
      %p172 = por %p170, %p171
      %p173 = scmp.ne.s32.totalorder %s164, %s165
      %p174 = scmp.eq.s32.totalorder %s28, 0
      %p175 = por %p173, %p174
      %p176 = scmp.ne.s32.totalorder %s164, %s165
      %p177 = scmp.eq.s32.totalorder %s29, 1
      %p178 = por %p176, %p177
      %p180 = scmp.ne.s32.totalorder %s165, %s179
      %p181 = scmp.eq.s32.totalorder %s29, 0
      %p182 = por %p180, %p181
      %s184 = sadd.s32 %s183, 1
      %p187 = scmp.eq.s32.totalorder %s23, 1
      %p188 = scmp.ne.s32.totalorder %s183, %s185
      %p189 = scmp.eq.s32.totalorder %s23, 0
      %p190 = por %p188, %p189
      %p191 = scmp.ne.s32.totalorder %s183, %s185
      %p192 = scmp.eq.s32.totalorder %s28, 1
      %p193 = por %p191, %p192
      %p194 = scmp.ne.s32.totalorder %s185, %s186
      %p195 = scmp.eq.s32.totalorder %s28, 0
      %p196 = por %p194, %p195
      %p197 = scmp.ne.s32.totalorder %s185, %s186
      %p198 = scmp.eq.s32.totalorder %s29, 1
      %p199 = por %p197, %p198
      %p201 = scmp.ne.s32.totalorder %s186, %s200
      %p202 = scmp.eq.s32.totalorder %s29, 0
      %p203 = por %p201, %p202
      %s205 = sadd.s32 %s204, 1
      %p208 = scmp.eq.s32.totalorder %s23, 1
      %p209 = scmp.ne.s32.totalorder %s204, %s206
      %p210 = scmp.eq.s32.totalorder %s23, 0
      %p211 = por %p209, %p210
      %p212 = scmp.ne.s32.totalorder %s204, %s206
      %p213 = scmp.eq.s32.totalorder %s28, 1
      %p214 = por %p212, %p213
      %p215 = scmp.ne.s32.totalorder %s206, %s207
      %p216 = scmp.eq.s32.totalorder %s28, 0
      %p217 = por %p215, %p216
      %p218 = scmp.ne.s32.totalorder %s206, %s207
      %p219 = scmp.eq.s32.totalorder %s29, 1
      %p220 = por %p218, %p219
      %p222 = scmp.ne.s32.totalorder %s207, %s221
      %p223 = scmp.eq.s32.totalorder %s29, 0
      %p224 = por %p222, %p223
      %s225 = ssub.s32 %s23, %s30
      %p226 = scmp.eq.s32.totalorder %s225, 0
      %s228 = sadd.s32 %s227, 1
      %s229 = scalar_select %p226, %s227, %s228
      %p232 = pneg %p226
      %p233 = scmp.eq.s32.totalorder %s23, 1
      %p234 = por %p232, %p233
      %p235 = scmp.ne.s32.totalorder %s227, %s230
      %p236 = scmp.eq.s32.totalorder %s23, 0
      %p237 = por %p235, %p236
      %p238 = scmp.ne.s32.totalorder %s227, %s230
      %p239 = scmp.eq.s32.totalorder %s28, 1
      %p240 = por %p238, %p239
      %p241 = scmp.ne.s32.totalorder %s230, %s231
      %p242 = scmp.eq.s32.totalorder %s28, 0
      %p243 = por %p241, %p242
      %p244 = scmp.ne.s32.totalorder %s230, %s231
      %p245 = scmp.eq.s32.totalorder %s29, 1
      %p246 = por %p244, %p245
      %p248 = scmp.ne.s32.totalorder %s231, %s247
      %p249 = scmp.eq.s32.totalorder %s29, 0
      %p250 = por %p248, %p249
      %p251 = scmp.le.s32.totalorder 1, %s23
      %p252 = scmp.lt.s32.totalorder %s23, 3
      %p253 = pnand %p251, %p252
      %p254 = pneg %p253
      // Predicated region
      $region9: #{tpu_custom_call.1} parent=5 // pred_check
        _
      $region10: #{tpu_custom_call.1} parent=5 // pred_check_branch
        %256 = sbr.rel (%p253) target = $region12
      $region11: #{tpu_custom_call.1} parent=5 // pred_region
        %s257 = ssub.s32 %s23, 1
        // Predicated region
        $region13: #{tpu_custom_call.1} parent=11 // pred_check
          %p258 = pneg %p70
        $region14: #{tpu_custom_call.1} parent=11 // pred_check_branch
          %260 = sbr.rel (%p258) target = $region16
        $region15: #{tpu_custom_call.1} parent=11 // pred_region
          %s262 = ssub.s32 512, 512
          %263 = vsyncadd [#allocation6], %s262
          %s264 = sshll.u32 [#allocation5], 4
          %s265 = int_to_ptr.vmem [resolvable:$true] %s264
          %270 = dma.hbm_to_vmem [thread:$0]  %s1, 512, %s265, [#allocation6], 128, 128, 8
        $region16: #{tpu_custom_call.1} parent=11 // pred_fallthru
          _
        // Predicated region
        $region17: #{tpu_custom_call.1} parent=11 // pred_check
          %p271 = pneg %p91
        $region18: #{tpu_custom_call.1} parent=11 // pred_check_branch
          %273 = sbr.rel (%p271) target = $region20
        $region19: #{tpu_custom_call.1} parent=11 // pred_region
          _
        $region20: #{tpu_custom_call.1} parent=11 // pred_fallthru
          _
        // Predicated region
        $region21: #{tpu_custom_call.1} parent=11 // pred_check
          %p274 = pneg %p112
        $region22: #{tpu_custom_call.1} parent=11 // pred_check_branch
          %276 = sbr.rel (%p274) target = $region24
        $region23: #{tpu_custom_call.1} parent=11 // pred_region
          %s278 = ssub.s32 512, 512
          %279 = vsyncadd [#allocation6], %s278
          %s280 = sshll.u32 [#allocation7], 4
          %s281 = int_to_ptr.vmem [resolvable:$true] %s280
          %286 = dma.hbm_to_vmem [thread:$0]  %s3, 512, %s281, [#allocation6], 128, 128, 8
        $region24: #{tpu_custom_call.1} parent=11 // pred_fallthru
          _
        // Predicated region
        $region25: #{tpu_custom_call.1} parent=11 // pred_check
          %p287 = pneg %p133
        $region26: #{tpu_custom_call.1} parent=11 // pred_check_branch
          %289 = sbr.rel (%p287) target = $region28
        $region27: #{tpu_custom_call.1} parent=11 // pred_region
          _
        $region28: #{tpu_custom_call.1} parent=11 // pred_fallthru
          _
        // Predicated region
        $region29: #{tpu_custom_call.1} parent=11 // pred_check
          %p290 = pneg %p154
        $region30: #{tpu_custom_call.1} parent=11 // pred_check_branch
          %292 = sbr.rel (%p290) target = $region32
        $region31: #{tpu_custom_call.1} parent=11 // pred_region
          %s294 = ssub.s32 512, 512
          %295 = vsyncadd [#allocation9], %s294
          %s296 = sshll.u32 [#allocation8], 4
          %s297 = int_to_ptr.vmem [resolvable:$true] %s296
          %302 = dma.hbm_to_vmem [thread:$0]  %s5, 512, %s297, [#allocation9], 128, 128, 8
        $region32: #{tpu_custom_call.1} parent=11 // pred_fallthru
          _
        // Predicated region
        $region33: #{tpu_custom_call.1} parent=11 // pred_check
          %p303 = pneg %p175
        $region34: #{tpu_custom_call.1} parent=11 // pred_check_branch
          %305 = sbr.rel (%p303) target = $region36
        $region35: #{tpu_custom_call.1} parent=11 // pred_region
          _
        $region36: #{tpu_custom_call.1} parent=11 // pred_fallthru
          _
        // Predicated region
        $region37: #{tpu_custom_call.1} parent=11 // pred_check
          %p306 = pneg %p196
        $region38: #{tpu_custom_call.1} parent=11 // pred_check_branch
          %308 = sbr.rel (%p306) target = $region40
        $region39: #{tpu_custom_call.1} parent=11 // pred_region
          %s310 = ssub.s32 512, 512
          %311 = vsyncadd [#allocation9], %s310
          %s312 = sshll.u32 [#allocation10], 4
          %s313 = int_to_ptr.vmem [resolvable:$true] %s312
          %318 = dma.hbm_to_vmem [thread:$0]  %s7, 512, %s313, [#allocation9], 128, 128, 8
        $region40: #{tpu_custom_call.1} parent=11 // pred_fallthru
          _
        // Predicated region
        $region41: #{tpu_custom_call.1} parent=11 // pred_check
          %p319 = pneg %p217
        $region42: #{tpu_custom_call.1} parent=11 // pred_check_branch
          %321 = sbr.rel (%p319) target = $region44
        $region43: #{tpu_custom_call.1} parent=11 // pred_region
          _
        $region44: #{tpu_custom_call.1} parent=11 // pred_fallthru
          _
      $region12: #{tpu_custom_call.1} parent=5 // pred_fallthru
        _
      %p322 = scmp.lt.s32.totalorder %s23, 2
      // Predicated region
      $region45: #{tpu_custom_call.1} parent=5 // pred_check
        %p323 = pneg %p322
      $region46: #{tpu_custom_call.1} parent=5 // pred_check_branch
        %325 = sbr.rel (%p323) target = $region48
      $region47: #{tpu_custom_call.1} parent=5 // pred_region
        // Predicated region
        $region49: #{tpu_custom_call.1} parent=47 // pred_check
          %p326 = pneg %p43
        $region50: #{tpu_custom_call.1} parent=47 // pred_check_branch
          %328 = sbr.rel (%p326) target = $region52
        $region51: #{tpu_custom_call.1} parent=47 // pred_region
          %s329 = sand.u32 %s33, 1
          %s330 = scalar_lea.sflag [#allocation3], %s329
          %s331 = sand.u32 %s33, 1
          %s332 = smul.addr %s331, 8
          %s333 = scalar_lea.vmem [#allocation2], %s332
          %s335 = ssub.s32 128, 128
          %336 = vsyncadd %s330, %s335
          %s337 = smul.addr %s23, 128
          %s338 = scalar_lea.hbm %s0, %s337
          %s340 = sshll.u32 %s333, 4
          %s341 = int_to_ptr.vmem [resolvable:$true] %s340
          %343 = dma.hbm_to_vmem [thread:$0]  %s338, 128, %s341, %s330
        $region52: #{tpu_custom_call.1} parent=47 // pred_fallthru
          _
      $region48: #{tpu_custom_call.1} parent=5 // pred_fallthru
        _
      %p344 = scmp.le.s32.totalorder 1, %s23
      %p345 = scmp.lt.s32.totalorder %s23, 3
      %p346 = pnand %p344, %p345
      %p347 = pneg %p346
      // Predicated region
      $region53: #{tpu_custom_call.1} parent=5 // pred_check
        _
      $region54: #{tpu_custom_call.1} parent=5 // pred_check_branch
        %349 = sbr.rel (%p346) target = $region56
      $region55: #{tpu_custom_call.1} parent=5 // pred_region
        %s350 = ssub.s32 %s23, 1
        %s351 = sand.u32 %s36, 1
        %s352 = scalar_lea.sflag [#allocation3], %s351
        %s353 = sand.u32 %s36, 1
        %s354 = smul.addr %s353, 8
        %s355 = scalar_lea.vmem [#allocation2], %s354
        // Predicated region
        $region57: #{tpu_custom_call.1} parent=55 // pred_check
          %p356 = pneg %p49
        $region58: #{tpu_custom_call.1} parent=55 // pred_check_branch
          %358 = sbr.rel (%p356) target = $region60
        $region59: #{tpu_custom_call.1} parent=55 // pred_region
          %359 = dma.done %s352, 128
        $region60: #{tpu_custom_call.1} parent=55 // pred_fallthru
          _
        // Predicated region
        $region61: #{tpu_custom_call.1} parent=55 // pred_check
          %p360 = pneg %p70
        $region62: #{tpu_custom_call.1} parent=55 // pred_check_branch
          %362 = sbr.rel (%p360) target = $region64
        $region63: #{tpu_custom_call.1} parent=55 // pred_region
          %363 = dma.done [#allocation6], 512
        $region64: #{tpu_custom_call.1} parent=55 // pred_fallthru
          _
        // Predicated region
        $region65: #{tpu_custom_call.1} parent=55 // pred_check
          %p364 = pneg %p112
        $region66: #{tpu_custom_call.1} parent=55 // pred_check_branch
          %366 = sbr.rel (%p364) target = $region68
        $region67: #{tpu_custom_call.1} parent=55 // pred_region
          %367 = dma.done [#allocation6], 512
        $region68: #{tpu_custom_call.1} parent=55 // pred_fallthru
          _
        // Predicated region
        $region69: #{tpu_custom_call.1} parent=55 // pred_check
          %p368 = pneg %p154
        $region70: #{tpu_custom_call.1} parent=55 // pred_check_branch
          %370 = sbr.rel (%p368) target = $region72
        $region71: #{tpu_custom_call.1} parent=55 // pred_region
          %371 = dma.done [#allocation9], 512
        $region72: #{tpu_custom_call.1} parent=55 // pred_fallthru
          _
        // Predicated region
        $region73: #{tpu_custom_call.1} parent=55 // pred_check
          %p372 = pneg %p196
        $region74: #{tpu_custom_call.1} parent=55 // pred_check_branch
          %374 = sbr.rel (%p372) target = $region76
        $region75: #{tpu_custom_call.1} parent=55 // pred_region
          %375 = dma.done [#allocation9], 512
        $region76: #{tpu_custom_call.1} parent=55 // pred_fallthru
          _
        %s376 = sand.u32 %s36, 1
        %s377 = scalar_lea.sflag [#allocation3], %s376
        %s378 = sand.u32 %s36, 1
        %s379 = smul.addr %s378, 8
        %s380 = scalar_lea.vmem [#allocation2], %s379
        %p381 = pneg %p49
        %p382 = pneg %p46
        %p383 = pneg %p70
        %p384 = pneg %p67
        %p385 = pneg %p91
        %p386 = pneg %p88
        %p387 = pneg %p112
        %p388 = pneg %p109
        %p389 = pneg %p133
        %p390 = pneg %p130
        %p391 = pneg %p154
        %p392 = pneg %p151
        %p393 = pneg %p175
        %p394 = pneg %p172
        %p395 = pneg %p196
        %p396 = pneg %p193
        %p397 = pneg %p217
        %p398 = pneg %p214
        %p399 = pneg %p243
        %p400 = pneg %p240
        %s401 = sand.u32 %s230, 1
        %s402 = scalar_lea.sflag [#allocation4], %s401
        %s403 = sand.u32 %s230, 1
        %s404 = smul.addr %s403, 8
        %s405 = scalar_lea.vmem [#allocation11], %s404
        %v406 = vld [vmem:[%s355] sm:$0xff]
        %v407 = vld [vmem:[#allocation5] sm:$0xff]
        %v408 = vld [vmem:[#allocation5 + $0x8] sm:$0xff]
        %v409 = vld [vmem:[#allocation5 + $0x10] sm:$0xff]
        %v410 = vld [vmem:[#allocation5 + $0x18] sm:$0xff]
        %v411 = vld [vmem:[#allocation7] sm:$0xff]
        %v412 = vld [vmem:[#allocation7 + $0x8] sm:$0xff]
        %v413 = vld [vmem:[#allocation7 + $0x10] sm:$0xff]
        %v414 = vld [vmem:[#allocation7 + $0x18] sm:$0xff]
        %v415 = vld [vmem:[#allocation8] sm:$0xff]
        %v416 = vld [vmem:[#allocation8 + $0x8] sm:$0xff]
        %v417 = vld [vmem:[#allocation8 + $0x10] sm:$0xff]
        %v418 = vld [vmem:[#allocation8 + $0x18] sm:$0xff]
        %v419 = vld [vmem:[#allocation10] sm:$0xff]
        %v420 = vld [vmem:[#allocation10 + $0x8] sm:$0xff]
        %v421 = vld [vmem:[#allocation10 + $0x10] sm:$0xff]
        %v422 = vld [vmem:[#allocation10 + $0x18] sm:$0xff]
        %v423 = vld [vmem:[%s2] sm:$0x1]
        %v424 = vld [vmem:[%s4] sm:$0x1]
        %v425 = vld [vmem:[%s6] sm:$0x1]
        %v426 = vld [vmem:[%s8] sm:$0x1]
        %v428 = vlaneseq
        %v429 = vshrl.u32 %v428, 7
        %v430 = vsub.s32 0, %v429
        %v431 = vrot.slane %v423, %v430
        %vm433 = vcmask 261120
        %v435 = vsel %vm433, %v406, 0
        %437 = vmatprep.subr.mxu0 0.0
        %438 = vmatpush1.msra.mxu0 %v407
        %439 = vmatprep.subr.mxu0 0.0
        %440 = vmatpush1.msra.mxu0 %v408
        %441 = vmatprep.subr.mxu0 0.0
        %442 = vmatpush1.msra.mxu0 %v409
        %443 = vmatprep.subr.mxu0 0.0
        %444 = vmatpush1.msra.mxu0 %v410
        %445 = vmatprep.subr.mxu0 0.0
        %446 = vmatpush1.msra.mxu0 0.0
        %447 = vmatprep.subr.mxu0 0.0
        %448 = vmatpush1.msra.mxu0 0.0
        %449 = vmatprep.subr.mxu0 0.0
        %450 = vmatpush1.msra.mxu0 0.0
        %451 = vmatprep.subr.mxu0 0.0
        %452 = vmatpush1.msra.mxu0 0.0
        %453 = vmatprep.subr.mxu0 0.0
        %454 = vmatpush1.msra.mxu0 0.0
        %455 = vmatprep.subr.mxu0 0.0
        %456 = vmatpush1.msra.mxu0 0.0
        %457 = vmatprep.subr.mxu0 0.0
        %458 = vmatpush1.msra.mxu0 0.0
        %459 = vmatprep.subr.mxu0 0.0
        %460 = vmatpush1.msra.mxu0 0.0
        %461 = vmatprep.subr.mxu0 0.0
        %462 = vmatpush1.msra.mxu0 0.0
        %463 = vmatprep.subr.mxu0 0.0
        %464 = vmatpush1.msra.mxu0 0.0
        %465 = vmatprep.subr.mxu0 0.0
        %466 = vmatpush1.msra.mxu0 0.0
        %467 = vmatprep.subr.mxu0 0.0
        %468 = vmatpush1.msra.mxu0 0.0
        %469 = vmatprep.subr.mxu0 0.0
        %470 = vmatpush1.msra.mxu0 0.0
        %471 = vmatprep.subr.mxu0 0.0
        %472 = vmatpush1.msra.mxu0 0.0
        %473 = vmatprep.subr.mxu0 0.0
        %474 = vmatpush1.msra.mxu0 0.0
        %475 = vmatprep.subr.mxu0 0.0
        %476 = vmatpush1.msra.mxu0 0.0
        %477 = vmatprep.subr.mxu0 0.0
        %478 = vmatpush1.msra.mxu0 0.0
        %479 = vmatprep.subr.mxu0 0.0
        %480 = vmatpush1.msra.mxu0 0.0
        %481 = vmatprep.subr.mxu0 0.0
        %482 = vmatpush1.msra.mxu0 0.0
        %483 = vmatprep.subr.mxu0 0.0
        %484 = vmatpush1.msra.mxu0 0.0
        %485 = vmatprep.subr.mxu0 0.0
        %486 = vmatpush1.msra.mxu0 0.0
        %487 = vmatprep.subr.mxu0 0.0
        %488 = vmatpush1.msra.mxu0 0.0
        %489 = vmatprep.subr.mxu0 0.0
        %490 = vmatpush1.msra.mxu0 0.0
        %491 = vmatprep.subr.mxu0 0.0
        %492 = vmatpush1.msra.mxu0 0.0
        %493 = vmatprep.subr.mxu0 0.0
        %494 = vmatpush1.msra.mxu0 0.0
        %495 = vmatprep.subr.mxu0 0.0
        %496 = vmatpush1.msra.mxu0 0.0
        %497 = vmatprep.subr.mxu0 0.0
        %498 = vmatpush1.msra.mxu0 0.0
        %499 = vmatprep.subr.mxu0 0.0
        %500 = vmatpush1.msra.mxu0 0.0
        %501 = vmatprep.mubr.f32.mxu0 0.0
        %502 = vmatmul.mubr.f32.gmra.mrb[0].mxu0 %v435
        %v503 = vpop.f32.mrb[0].mxu0
        %v504 = vadd.f32 %v431, %v503
        %v505 = vpop.f32.mrb[0].mxu0
        %506 = vdwg.mxu0
        %v508 = vlaneseq
        %v509 = vshrl.u32 %v508, 7
        %v510 = vsub.s32 0, %v509
        %v511 = vrot.slane %v424, %v510
        %513 = vmatprep.subr.mxu0 0.0
        %514 = vmatpush1.msra.mxu0 %v411
        %515 = vmatprep.subr.mxu0 0.0
        %516 = vmatpush1.msra.mxu0 %v412
        %517 = vmatprep.subr.mxu0 0.0
        %518 = vmatpush1.msra.mxu0 %v413
        %519 = vmatprep.subr.mxu0 0.0
        %520 = vmatpush1.msra.mxu0 %v414
        %521 = vmatprep.subr.mxu0 0.0
        %522 = vmatpush1.msra.mxu0 0.0
        %523 = vmatprep.subr.mxu0 0.0
        %524 = vmatpush1.msra.mxu0 0.0
        %525 = vmatprep.subr.mxu0 0.0
        %526 = vmatpush1.msra.mxu0 0.0
        %527 = vmatprep.subr.mxu0 0.0
        %528 = vmatpush1.msra.mxu0 0.0
        %529 = vmatprep.subr.mxu0 0.0
        %530 = vmatpush1.msra.mxu0 0.0
        %531 = vmatprep.subr.mxu0 0.0
        %532 = vmatpush1.msra.mxu0 0.0
        %533 = vmatprep.subr.mxu0 0.0
        %534 = vmatpush1.msra.mxu0 0.0
        %535 = vmatprep.subr.mxu0 0.0
        %536 = vmatpush1.msra.mxu0 0.0
        %537 = vmatprep.subr.mxu0 0.0
        %538 = vmatpush1.msra.mxu0 0.0
        %539 = vmatprep.subr.mxu0 0.0
        %540 = vmatpush1.msra.mxu0 0.0
        %541 = vmatprep.subr.mxu0 0.0
        %542 = vmatpush1.msra.mxu0 0.0
        %543 = vmatprep.subr.mxu0 0.0
        %544 = vmatpush1.msra.mxu0 0.0
        %545 = vmatprep.subr.mxu0 0.0
        %546 = vmatpush1.msra.mxu0 0.0
        %547 = vmatprep.subr.mxu0 0.0
        %548 = vmatpush1.msra.mxu0 0.0
        %549 = vmatprep.subr.mxu0 0.0
        %550 = vmatpush1.msra.mxu0 0.0
        %551 = vmatprep.subr.mxu0 0.0
        %552 = vmatpush1.msra.mxu0 0.0
        %553 = vmatprep.subr.mxu0 0.0
        %554 = vmatpush1.msra.mxu0 0.0
        %555 = vmatprep.subr.mxu0 0.0
        %556 = vmatpush1.msra.mxu0 0.0
        %557 = vmatprep.subr.mxu0 0.0
        %558 = vmatpush1.msra.mxu0 0.0
        %559 = vmatprep.subr.mxu0 0.0
        %560 = vmatpush1.msra.mxu0 0.0
        %561 = vmatprep.subr.mxu0 0.0
        %562 = vmatpush1.msra.mxu0 0.0
        %563 = vmatprep.subr.mxu0 0.0
        %564 = vmatpush1.msra.mxu0 0.0
        %565 = vmatprep.subr.mxu0 0.0
        %566 = vmatpush1.msra.mxu0 0.0
        %567 = vmatprep.subr.mxu0 0.0
        %568 = vmatpush1.msra.mxu0 0.0
        %569 = vmatprep.subr.mxu0 0.0
        %570 = vmatpush1.msra.mxu0 0.0
        %571 = vmatprep.subr.mxu0 0.0
        %572 = vmatpush1.msra.mxu0 0.0
        %573 = vmatprep.subr.mxu0 0.0
        %574 = vmatpush1.msra.mxu0 0.0
        %575 = vmatprep.subr.mxu0 0.0
        %576 = vmatpush1.msra.mxu0 0.0
        %577 = vmatprep.mubr.f32.mxu0 0.0
        %578 = vmatmul.mubr.f32.gmra.mrb[0].mxu0 %v435
        %v579 = vpop.f32.mrb[0].mxu0
        %v580 = vadd.f32 %v511, %v579
        %v581 = vpop.f32.mrb[0].mxu0
        %582 = vdwg.mxu0
        %v584 = vlaneseq
        %v585 = vshrl.u32 %v584, 7
        %v586 = vsub.s32 0, %v585
        %v587 = vrot.slane %v425, %v586
        %589 = vmatprep.subr.mxu0 0.0
        %590 = vmatpush1.msra.mxu0 %v415
        %591 = vmatprep.subr.mxu0 0.0
        %592 = vmatpush1.msra.mxu0 %v416
        %593 = vmatprep.subr.mxu0 0.0
        %594 = vmatpush1.msra.mxu0 %v417
        %595 = vmatprep.subr.mxu0 0.0
        %596 = vmatpush1.msra.mxu0 %v418
        %597 = vmatprep.subr.mxu0 0.0
        %598 = vmatpush1.msra.mxu0 0.0
        %599 = vmatprep.subr.mxu0 0.0
        %600 = vmatpush1.msra.mxu0 0.0
        %601 = vmatprep.subr.mxu0 0.0
        %602 = vmatpush1.msra.mxu0 0.0
        %603 = vmatprep.subr.mxu0 0.0
        %604 = vmatpush1.msra.mxu0 0.0
        %605 = vmatprep.subr.mxu0 0.0
        %606 = vmatpush1.msra.mxu0 0.0
        %607 = vmatprep.subr.mxu0 0.0
        %608 = vmatpush1.msra.mxu0 0.0
        %609 = vmatprep.subr.mxu0 0.0
        %610 = vmatpush1.msra.mxu0 0.0
        %611 = vmatprep.subr.mxu0 0.0
        %612 = vmatpush1.msra.mxu0 0.0
        %613 = vmatprep.subr.mxu0 0.0
        %614 = vmatpush1.msra.mxu0 0.0
        %615 = vmatprep.subr.mxu0 0.0
        %616 = vmatpush1.msra.mxu0 0.0
        %617 = vmatprep.subr.mxu0 0.0
        %618 = vmatpush1.msra.mxu0 0.0
        %619 = vmatprep.subr.mxu0 0.0
        %620 = vmatpush1.msra.mxu0 0.0
        %621 = vmatprep.subr.mxu0 0.0
        %622 = vmatpush1.msra.mxu0 0.0
        %623 = vmatprep.subr.mxu0 0.0
        %624 = vmatpush1.msra.mxu0 0.0
        %625 = vmatprep.subr.mxu0 0.0
        %626 = vmatpush1.msra.mxu0 0.0
        %627 = vmatprep.subr.mxu0 0.0
        %628 = vmatpush1.msra.mxu0 0.0
        %629 = vmatprep.subr.mxu0 0.0
        %630 = vmatpush1.msra.mxu0 0.0
        %631 = vmatprep.subr.mxu0 0.0
        %632 = vmatpush1.msra.mxu0 0.0
        %633 = vmatprep.subr.mxu0 0.0
        %634 = vmatpush1.msra.mxu0 0.0
        %635 = vmatprep.subr.mxu0 0.0
        %636 = vmatpush1.msra.mxu0 0.0
        %637 = vmatprep.subr.mxu0 0.0
        %638 = vmatpush1.msra.mxu0 0.0
        %639 = vmatprep.subr.mxu0 0.0
        %640 = vmatpush1.msra.mxu0 0.0
        %641 = vmatprep.subr.mxu0 0.0
        %642 = vmatpush1.msra.mxu0 0.0
        %643 = vmatprep.subr.mxu0 0.0
        %644 = vmatpush1.msra.mxu0 0.0
        %645 = vmatprep.subr.mxu0 0.0
        %646 = vmatpush1.msra.mxu0 0.0
        %647 = vmatprep.subr.mxu0 0.0
        %648 = vmatpush1.msra.mxu0 0.0
        %649 = vmatprep.subr.mxu0 0.0
        %650 = vmatpush1.msra.mxu0 0.0
        %651 = vmatprep.subr.mxu0 0.0
        %652 = vmatpush1.msra.mxu0 0.0
        %653 = vmatprep.mubr.f32.mxu0 0.0
        %654 = vmatmul.mubr.f32.gmra.mrb[0].mxu0 %v435
        %v655 = vpop.f32.mrb[0].mxu0
        %v656 = vadd.f32 %v587, %v655
        %v657 = vpop.f32.mrb[0].mxu0
        %658 = vdwg.mxu0
        %v660 = vsel %vm433, %v504, 0
        %v663 = vsel %vm433, %v580, 0
        %665 = vmatprep.subr.mxu0 0.0
        %666 = vmatpush1.xpose.msra.mxu0 %v663
        %667 = vmatprep.subr.mxu0 0.0
        %668 = vmatpush1.xpose.msra.mxu0 0.0
        %669 = vmatprep.subr.mxu0 0.0
        %670 = vmatpush1.xpose.msra.mxu0 0.0
        %671 = vmatprep.subr.mxu0 0.0
        %672 = vmatpush1.xpose.msra.mxu0 0.0
        %673 = vmatprep.subr.mxu0 0.0
        %674 = vmatpush1.xpose.msra.mxu0 0.0
        %675 = vmatprep.subr.mxu0 0.0
        %676 = vmatpush1.xpose.msra.mxu0 0.0
        %677 = vmatprep.subr.mxu0 0.0
        %678 = vmatpush1.xpose.msra.mxu0 0.0
        %679 = vmatprep.subr.mxu0 0.0
        %680 = vmatpush1.xpose.msra.mxu0 0.0
        %681 = vmatprep.subr.mxu0 0.0
        %682 = vmatpush1.xpose.msra.mxu0 0.0
        %683 = vmatprep.subr.mxu0 0.0
        %684 = vmatpush1.xpose.msra.mxu0 0.0
        %685 = vmatprep.subr.mxu0 0.0
        %686 = vmatpush1.xpose.msra.mxu0 0.0
        %687 = vmatprep.subr.mxu0 0.0
        %688 = vmatpush1.xpose.msra.mxu0 0.0
        %689 = vmatprep.subr.mxu0 0.0
        %690 = vmatpush1.xpose.msra.mxu0 0.0
        %691 = vmatprep.subr.mxu0 0.0
        %692 = vmatpush1.xpose.msra.mxu0 0.0
        %693 = vmatprep.subr.mxu0 0.0
        %694 = vmatpush1.xpose.msra.mxu0 0.0
        %695 = vmatprep.subr.mxu0 0.0
        %696 = vmatpush1.xpose.msra.mxu0 0.0
        %697 = vmatprep.subr.mxu0 0.0
        %698 = vmatpush1.xpose.msra.mxu0 0.0
        %699 = vmatprep.subr.mxu0 0.0
        %700 = vmatpush1.xpose.msra.mxu0 0.0
        %701 = vmatprep.subr.mxu0 0.0
        %702 = vmatpush1.xpose.msra.mxu0 0.0
        %703 = vmatprep.subr.mxu0 0.0
        %704 = vmatpush1.xpose.msra.mxu0 0.0
        %705 = vmatprep.subr.mxu0 0.0
        %706 = vmatpush1.xpose.msra.mxu0 0.0
        %707 = vmatprep.subr.mxu0 0.0
        %708 = vmatpush1.xpose.msra.mxu0 0.0
        %709 = vmatprep.subr.mxu0 0.0
        %710 = vmatpush1.xpose.msra.mxu0 0.0
        %711 = vmatprep.subr.mxu0 0.0
        %712 = vmatpush1.xpose.msra.mxu0 0.0
        %713 = vmatprep.subr.mxu0 0.0
        %714 = vmatpush1.xpose.msra.mxu0 0.0
        %715 = vmatprep.subr.mxu0 0.0
        %716 = vmatpush1.xpose.msra.mxu0 0.0
        %717 = vmatprep.subr.mxu0 0.0
        %718 = vmatpush1.xpose.msra.mxu0 0.0
        %719 = vmatprep.subr.mxu0 0.0
        %720 = vmatpush1.xpose.msra.mxu0 0.0
        %721 = vmatprep.subr.mxu0 0.0
        %722 = vmatpush1.xpose.msra.mxu0 0.0
        %723 = vmatprep.subr.mxu0 0.0
        %724 = vmatpush1.xpose.msra.mxu0 0.0
        %725 = vmatprep.subr.mxu0 0.0
        %726 = vmatpush1.xpose.msra.mxu0 0.0
        %727 = vmatprep.subr.mxu0 0.0
        %728 = vmatpush1.xpose.msra.mxu0 0.0
        %729 = vmatprep.mubr.f32.mxu0 0.0
        %730 = vmatmul.mubr.f32.gmra.mrb[0].mxu0 %v660
        %v731 = vpop.f32.mrb[0].mxu0
        %v732 = vadd.f32 0.0, %v731
        %v733 = vpop.f32.mrb[0].mxu0
        %734 = vdwg.mxu0
        %v735 = vmul.f32 %v732, 0.17677669
        %vm736 = vcmask 64512
        %v737 = vsel %vm736, %v735, -inf
        %738 = vmax.xlane.f32.xlu0 %v737
        %v739 = vpop.xlane.xlu0 %738
        %v740 = vsub.f32 %v735, %v739
        %v741 = vmul.f32 %v740, 1.442695
        %v742 = vpow.pop %v741
        %v743 = vsel %vm736, %v742, 0.0
        %744 = vadd.xlane.f32.xlu0 %v743
        %v745 = vpop.xlane.xlu0 %744
        %v746 = vrcp.pop %v745
        %v747 = vmul.f32 %v742, %v746
        %v749 = vsel %vm736, %v747, 0
        %751 = vmatprep.subr.mxu0 0.0
        %752 = vmatpush1.msra.mxu0 %v656
        %753 = vmatprep.subr.mxu0 0.0
        %754 = vmatpush1.msra.mxu0 0.0
        %755 = vmatprep.subr.mxu0 0.0
        %756 = vmatpush1.msra.mxu0 0.0
        %757 = vmatprep.subr.mxu0 0.0
        %758 = vmatpush1.msra.mxu0 0.0
        %759 = vmatprep.subr.mxu0 0.0
        %760 = vmatpush1.msra.mxu0 0.0
        %761 = vmatprep.subr.mxu0 0.0
        %762 = vmatpush1.msra.mxu0 0.0
        %763 = vmatprep.subr.mxu0 0.0
        %764 = vmatpush1.msra.mxu0 0.0
        %765 = vmatprep.subr.mxu0 0.0
        %766 = vmatpush1.msra.mxu0 0.0
        %767 = vmatprep.subr.mxu0 0.0
        %768 = vmatpush1.msra.mxu0 0.0
        %769 = vmatprep.subr.mxu0 0.0
        %770 = vmatpush1.msra.mxu0 0.0
        %771 = vmatprep.subr.mxu0 0.0
        %772 = vmatpush1.msra.mxu0 0.0
        %773 = vmatprep.subr.mxu0 0.0
        %774 = vmatpush1.msra.mxu0 0.0
        %775 = vmatprep.subr.mxu0 0.0
        %776 = vmatpush1.msra.mxu0 0.0
        %777 = vmatprep.subr.mxu0 0.0
        %778 = vmatpush1.msra.mxu0 0.0
        %779 = vmatprep.subr.mxu0 0.0
        %780 = vmatpush1.msra.mxu0 0.0
        %781 = vmatprep.subr.mxu0 0.0
        %782 = vmatpush1.msra.mxu0 0.0
        %783 = vmatprep.subr.mxu0 0.0
        %784 = vmatpush1.msra.mxu0 0.0
        %785 = vmatprep.subr.mxu0 0.0
        %786 = vmatpush1.msra.mxu0 0.0
        %787 = vmatprep.subr.mxu0 0.0
        %788 = vmatpush1.msra.mxu0 0.0
        %789 = vmatprep.subr.mxu0 0.0
        %790 = vmatpush1.msra.mxu0 0.0
        %791 = vmatprep.subr.mxu0 0.0
        %792 = vmatpush1.msra.mxu0 0.0
        %793 = vmatprep.subr.mxu0 0.0
        %794 = vmatpush1.msra.mxu0 0.0
        %795 = vmatprep.subr.mxu0 0.0
        %796 = vmatpush1.msra.mxu0 0.0
        %797 = vmatprep.subr.mxu0 0.0
        %798 = vmatpush1.msra.mxu0 0.0
        %799 = vmatprep.subr.mxu0 0.0
        %800 = vmatpush1.msra.mxu0 0.0
        %801 = vmatprep.subr.mxu0 0.0
        %802 = vmatpush1.msra.mxu0 0.0
        %803 = vmatprep.subr.mxu0 0.0
        %804 = vmatpush1.msra.mxu0 0.0
        %805 = vmatprep.subr.mxu0 0.0
        %806 = vmatpush1.msra.mxu0 0.0
        %807 = vmatprep.subr.mxu0 0.0
        %808 = vmatpush1.msra.mxu0 0.0
        %809 = vmatprep.subr.mxu0 0.0
        %810 = vmatpush1.msra.mxu0 0.0
        %811 = vmatprep.subr.mxu0 0.0
        %812 = vmatpush1.msra.mxu0 0.0
        %813 = vmatprep.subr.mxu0 0.0
        %814 = vmatpush1.msra.mxu0 0.0
        %815 = vmatprep.mubr.f32.mxu0 0.0
        %816 = vmatmul.mubr.f32.gmra.mrb[0].mxu0 %v749
        %v817 = vpop.f32.mrb[0].mxu0
        %v818 = vadd.f32 0.0, %v817
        %v819 = vpop.f32.mrb[0].mxu0
        %820 = vdwg.mxu0
        %v822 = vlaneseq
        %v823 = vshrl.u32 %v822, 7
        %v824 = vsub.s32 0, %v823
        %v825 = vrot.slane %v426, %v824
        %v828 = vsel %vm433, %v818, 0
        %830 = vmatprep.subr.mxu0 0.0
        %831 = vmatpush1.msra.mxu0 %v419
        %832 = vmatprep.subr.mxu0 0.0
        %833 = vmatpush1.msra.mxu0 %v420
        %834 = vmatprep.subr.mxu0 0.0
        %835 = vmatpush1.msra.mxu0 %v421
        %836 = vmatprep.subr.mxu0 0.0
        %837 = vmatpush1.msra.mxu0 %v422
        %838 = vmatprep.subr.mxu0 0.0
        %839 = vmatpush1.msra.mxu0 0.0
        %840 = vmatprep.subr.mxu0 0.0
        %841 = vmatpush1.msra.mxu0 0.0
        %842 = vmatprep.subr.mxu0 0.0
        %843 = vmatpush1.msra.mxu0 0.0
        %844 = vmatprep.subr.mxu0 0.0
        %845 = vmatpush1.msra.mxu0 0.0
        %846 = vmatprep.subr.mxu0 0.0
        %847 = vmatpush1.msra.mxu0 0.0
        %848 = vmatprep.subr.mxu0 0.0
        %849 = vmatpush1.msra.mxu0 0.0
        %850 = vmatprep.subr.mxu0 0.0
        %851 = vmatpush1.msra.mxu0 0.0
        %852 = vmatprep.subr.mxu0 0.0
        %853 = vmatpush1.msra.mxu0 0.0
        %854 = vmatprep.subr.mxu0 0.0
        %855 = vmatpush1.msra.mxu0 0.0
        %856 = vmatprep.subr.mxu0 0.0
        %857 = vmatpush1.msra.mxu0 0.0
        %858 = vmatprep.subr.mxu0 0.0
        %859 = vmatpush1.msra.mxu0 0.0
        %860 = vmatprep.subr.mxu0 0.0
        %861 = vmatpush1.msra.mxu0 0.0
        %862 = vmatprep.subr.mxu0 0.0
        %863 = vmatpush1.msra.mxu0 0.0
        %864 = vmatprep.subr.mxu0 0.0
        %865 = vmatpush1.msra.mxu0 0.0
        %866 = vmatprep.subr.mxu0 0.0
        %867 = vmatpush1.msra.mxu0 0.0
        %868 = vmatprep.subr.mxu0 0.0
        %869 = vmatpush1.msra.mxu0 0.0
        %870 = vmatprep.subr.mxu0 0.0
        %871 = vmatpush1.msra.mxu0 0.0
        %872 = vmatprep.subr.mxu0 0.0
        %873 = vmatpush1.msra.mxu0 0.0
        %874 = vmatprep.subr.mxu0 0.0
        %875 = vmatpush1.msra.mxu0 0.0
        %876 = vmatprep.subr.mxu0 0.0
        %877 = vmatpush1.msra.mxu0 0.0
        %878 = vmatprep.subr.mxu0 0.0
        %879 = vmatpush1.msra.mxu0 0.0
        %880 = vmatprep.subr.mxu0 0.0
        %881 = vmatpush1.msra.mxu0 0.0
        %882 = vmatprep.subr.mxu0 0.0
        %883 = vmatpush1.msra.mxu0 0.0
        %884 = vmatprep.subr.mxu0 0.0
        %885 = vmatpush1.msra.mxu0 0.0
        %886 = vmatprep.subr.mxu0 0.0
        %887 = vmatpush1.msra.mxu0 0.0
        %888 = vmatprep.subr.mxu0 0.0
        %889 = vmatpush1.msra.mxu0 0.0
        %890 = vmatprep.subr.mxu0 0.0
        %891 = vmatpush1.msra.mxu0 0.0
        %892 = vmatprep.subr.mxu0 0.0
        %893 = vmatpush1.msra.mxu0 0.0
        %894 = vmatprep.mubr.f32.mxu0 0.0
        %895 = vmatmul.mubr.f32.gmra.mrb[0].mxu0 %v828
        %v896 = vpop.f32.mrb[0].mxu0
        %v897 = vadd.f32 %v825, %v896
        %v898 = vpop.f32.mrb[0].mxu0
        %899 = vdwg.mxu0
        %900 = vst.msk [vmem:[%s405] sm:$0xff] %vm433, %v897
        %s901 = sand.u32 %s230, 1
        %s902 = scalar_lea.sflag [#allocation4], %s901
        %s903 = sand.u32 %s230, 1
        %s904 = smul.addr %s903, 8
        %s905 = scalar_lea.vmem [#allocation11], %s904
        // Predicated region
        $region77: #{tpu_custom_call.1} parent=55 // pred_check
          %p906 = pneg %p240
        $region78: #{tpu_custom_call.1} parent=55 // pred_check_branch
          %908 = sbr.rel (%p906) target = $region80
        $region79: #{tpu_custom_call.1} parent=55 // pred_region
          %s910 = ssub.s32 128, 128
          %911 = vsyncadd %s902, %s910
          %s912 = smul.addr %s28, 128
          %s913 = scalar_lea.hbm %s9, %s912
          %s915 = sshll.u32 %s905, 4
          %s916 = int_to_ptr.vmem [resolvable:$true] %s915
          %918 = dma.vmem_to_hbm [thread:$0]  %s916, 128, %s913, %s902
        $region80: #{tpu_custom_call.1} parent=55 // pred_fallthru
          _
      $region56: #{tpu_custom_call.1} parent=5 // pred_fallthru
        _
      %p919 = scmp.le.s32.totalorder 2, %s23
      // Predicated region
      $region81: #{tpu_custom_call.1} parent=5 // pred_check
        %p920 = pneg %p919
      $region82: #{tpu_custom_call.1} parent=5 // pred_check_branch
        %922 = sbr.rel (%p920) target = $region84
      $region83: #{tpu_custom_call.1} parent=5 // pred_region
        %s923 = ssub.s32 %s23, 2
        // Predicated region
        $region85: #{tpu_custom_call.1} parent=83 // pred_check
          %p924 = pneg %p246
        $region86: #{tpu_custom_call.1} parent=83 // pred_check_branch
          %926 = sbr.rel (%p924) target = $region88
        $region87: #{tpu_custom_call.1} parent=83 // pred_region
          %s927 = sand.u32 %s231, 1
          %s928 = scalar_lea.sflag [#allocation4], %s927
          %s929 = sand.u32 %s231, 1
          %s930 = smul.addr %s929, 8
          %s931 = scalar_lea.vmem [#allocation11], %s930
          %932 = dma.done %s928, 128
        $region88: #{tpu_custom_call.1} parent=83 // pred_fallthru
          _
      $region84: #{tpu_custom_call.1} parent=5 // pred_fallthru
        _
    $region6: #{tpu_custom_call.1} parent=1 // loop_footer
      %s27 = sadd.s32 1, %s23
    $region7: #{tpu_custom_call.1} parent=1 // loop_footer_branch
      %22 = sbr.rel target = $region3
    $region8: #{tpu_custom_call.1} parent=1 // loop_exit
      _
    %933 = vsyncpa [#allocation3], 1
    %s934 = scalar_lea.sflag [#allocation3], 1
    %935 = vsyncpa %s934, 1
    %936 = vsyncpa [#allocation6], 1
    %937 = vsyncpa [#allocation9], 1
    %938 = vsyncpa [#allocation4], 1
    %s939 = scalar_lea.sflag [#allocation4], 1
    %940 = vsyncpa %s939, 1

</llo_original>
